<compile_context>
chip_gen: v7x
topology: tpu7x:2x2x1
jax: 0.10.0
libtpu: 0.0.40
codegen_flags: <defaults>
</compile_context>

<pallas_src>
import jax
import jax.numpy as jnp
from jax.experimental import pallas as pl
from jax.experimental.pallas import tpu as pltpu


def _round_up(n: int, m: int) -> int:
    return ((n + m - 1) // m) * m


def _vmem_capacity_bytes() -> int:
    """Physical VMEM of the local TPU generation (64 MiB v7x, 128 MiB v5e/v6e)."""
    try:
        return int(pltpu.get_tpu_info().vmem_capacity_bytes)
    except Exception:
        return 64 << 20  # conservative: assume the smallest (v7x per-TC) VMEM


def _mlp_kernel(x_ref, w1_ref, b1_ref, w2_ref, b2_ref, w3_ref, b3_ref, out_ref):
    x = x_ref[...]                                                # (1, TB), batch on lanes

    # Layer 1: rank-1 outer product (H1, 1) @ (1, TB) on the (otherwise idle) MXU;
    # only the bias add + ReLU stay on the VPU.
    h = jnp.dot(w1_ref[...], x, preferred_element_type=jnp.float32)
    h = jnp.maximum(h + b1_ref[...], 0.0)                         # (H1, TB)

    # Layer 2: (H2, H1) @ (H1, TB) on the MXU; the batch tile fills the lane/N dimension.
    h = jnp.dot(w2_ref[...], h, preferred_element_type=jnp.float32)
    h = jnp.maximum(h + b2_ref[...], 0.0)                         # (H2, TB)

    # Layer 3: (1, H2) @ (H2, TB) on the MXU (replaces VPU multiply + XLU sublane reduce).
    o = jnp.dot(w3_ref[...], h, preferred_element_type=jnp.float32) + b3_ref[0, 0]
    out_ref[...] = o.astype(out_ref.dtype)                        # (1, TB), lane-dense store


def simple_net_forward(x, params, *, block_b: int = 65536):
    """x: (B, 1) float32.  Returns (B, 1) float32, identical math to the PyTorch module."""
    B = int(x.shape[0])
    H1 = params["w1"].shape[0]
    H2 = params["w2"].shape[0]

    # --- Generation-aware VMEM budget (review: v7x 64 MiB physical, v5e/v6e 128 MiB). ---
    cap = _vmem_capacity_bytes()
    vmem_limit = min(cap * 3 // 4, 96 << 20)          # 48 MiB on v7x, 96 MiB on v5e/v6e
    # Rough live-VMEM per batch lane (f32): h1 + h2 + one compiler temp of the wider layer
    # + double-buffered (1, TB) input/output rows.  Keep 2x headroom under vmem_limit.
    bytes_per_lane = 4 * (H1 + 2 * H2 + 4)
    tb_cap = max(128, ((vmem_limit // 2) // bytes_per_lane) // 128 * 128)

    # Lane-dense batch tile: always a multiple of 128 (defensive even for odd block_b),
    # capped by the VMEM-derived ceiling.
    TB = min(_round_up(max(min(block_b, B), 1), 128), tb_cap)

    n_blocks = pl.cdiv(B, TB)
    if n_blocks == 1 and B >= 256:
        # Split a single-tile grid so the "parallel" batch axis spans both TCs on v7x.
        TB = _round_up(pl.cdiv(B, 2), 128)
        n_blocks = pl.cdiv(B, TB)

    # (B, 1) -> (1, B) is layout-compatible: no HBM pass, unlike the old pad + transpose.
    x_row = x.astype(jnp.float32).reshape(1, B)

    def full_block(shape):
        # Grid-invariant weight/bias block: same tile every step -> loaded once, kept in VMEM.
        return pl.BlockSpec(shape, lambda i: (0, 0))

    out_row = pl.pallas_call(
        _mlp_kernel,
        out_shape=jax.ShapeDtypeStruct((1, B), jnp.float32),
        grid=(n_blocks,),
        in_specs=[
            pl.BlockSpec((1, TB), lambda i: (0, i)),              # x tile (lane-dense, ragged tail ok)
            full_block((H1, 1)),                                  # w1
            full_block((H1, 1)),                                  # b1
            full_block((H2, H1)),                                 # w2
            full_block((H2, 1)),                                  # b2
            full_block((1, H2)),                                  # w3 (row layout for MXU dot)
            pl.BlockSpec(memory_space=pltpu.MemorySpace.SMEM),    # b3 scalar in SMEM
        ],
        out_specs=pl.BlockSpec((1, TB), lambda i: (0, i)),        # lane-dense output tile
        compiler_params=pltpu.CompilerParams(
            dimension_semantics=("parallel",),                    # shard batch tiles across TCs
            vmem_limit_bytes=int(vmem_limit),                     # lift 16/32 MiB scoped defaults
        ),
    )(x_row, params["w1"], params["b1"], params["w2"], params["b2"],
      params["w3"], params["b3"])

    return out_row.reshape(B, 1)


def init_params(key, hidden_size, hidden_size2):
    """Deterministic init; shapes match nn.Linear in the transposed (features, batch) form."""
    k1, k2, k3, k4, k5, k6 = jax.random.split(key, 6)

    def uniform(k, shape, fan_in):
        bound = 1.0 / jnp.sqrt(jnp.float32(fan_in))
        return jax.random.uniform(k, shape, jnp.float32, -bound, bound)

    return {
        # layer1: nn.Linear(1, H1) -> weight (H1, 1), bias (H1, 1)
        "w1": uniform(k1, (hidden_size, 1), 1),
        "b1": uniform(k2, (hidden_size, 1), 1),
        # layer2: nn.Linear(H1, H2) -> weight (H2, H1), bias (H2, 1)
        "w2": uniform(k3, (hidden_size2, hidden_size), hidden_size),
        "b2": uniform(k4, (hidden_size2, 1), hidden_size),
        # layer3: nn.Linear(H2, 1) -> weight stored as a row (1, H2), bias (1, 1)
        "w3": uniform(k5, (1, hidden_size2), hidden_size2),
        "b3": uniform(k6, (1, 1), hidden_size2),
    }


def reference_forward(x, p):
    h = jnp.maximum(x @ p["w1"].T + p["b1"].T, 0.0)
    h = jnp.maximum(h @ p["w2"].T + p["b2"].T, 0.0)
    return h @ p["w3"].T + p["b3"]


if __name__ == "__main__":
    key = jax.random.PRNGKey(0)
    k_params, k_x1, k_x2 = jax.random.split(key, 3)

    hidden_size, hidden_size2 = 32, 32
    params = init_params(k_params, hidden_size, hidden_size2)

    # Case 1: tiny batch -> single ragged tile (8 valid lanes of a 128-lane block).
    x1 = jax.random.normal(k_x1, (8, 1), jnp.float32)
    out1 = jax.block_until_ready(simple_net_forward(x1, params))
    ref1 = reference_forward(x1, params)
    assert out1.shape == (8, 1)
    assert jnp.allclose(out1, ref1, atol=1e-5, rtol=1e-5)

    # Case 2: non-multiple batch with a small tile -> multi-step grid + ragged last block.
    x2 = jax.random.normal(k_x2, (200, 1), jnp.float32)
    out2 = jax.block_until_ready(simple_net_forward(x2, params, block_b=128))
    ref2 = reference_forward(x2, params)
    assert out2.shape == (200, 1)
    assert jnp.allclose(out2, ref2, atol=1e-5, rtol=1e-5)

    print("KERNEL_OK")
</pallas_src>

<mosaic_0001>
module attributes {stable_mosaic.version = 11 : i64} {
  func.func @_mlp_kernel(%arg0: i32, %arg1: memref<1x128xf32, #tpu.memory_space<vmem>>, %arg2: memref<32x1xf32, #tpu.memory_space<vmem>>, %arg3: memref<32x1xf32, #tpu.memory_space<vmem>>, %arg4: memref<32x32xf32, #tpu.memory_space<vmem>>, %arg5: memref<32x1xf32, #tpu.memory_space<vmem>>, %arg6: memref<1x32xf32, #tpu.memory_space<vmem>>, %arg7: memref<1x1xf32, #tpu.memory_space<smem>>, %arg8: memref<1x128xf32, #tpu.memory_space<vmem>>) attributes {dimension_semantics = [#tpu.dimension_semantics<parallel>], iteration_bounds = array<i64: 1>, scalar_prefetch = 0 : i64, scratch_operands = 0 : i64, tpu.core_type = #tpu.core_type<tc>, window_params = [{transform_indices = @transform_0, window_bounds = array<i64: 1, 128>}, {pipeline_mode = #tpu.pipeline_mode<synchronous>, transform_indices = @transform_1, window_bounds = array<i64: 32, 1>}, {pipeline_mode = #tpu.pipeline_mode<synchronous>, transform_indices = @transform_2, window_bounds = array<i64: 32, 1>}, {pipeline_mode = #tpu.pipeline_mode<synchronous>, transform_indices = @transform_3, window_bounds = array<i64: 32, 32>}, {pipeline_mode = #tpu.pipeline_mode<synchronous>, transform_indices = @transform_4, window_bounds = array<i64: 32, 1>}, {pipeline_mode = #tpu.pipeline_mode<synchronous>, transform_indices = @transform_5, window_bounds = array<i64: 1, 32>}, {transform_indices = @transform_6, window_bounds = array<i64: 1, 1>}, {transform_indices = @transform_7, window_bounds = array<i64: 1, 128>}]} {
    %c0 = arith.constant 0 : index
    %c0_0 = arith.constant 0 : index
    %0 = vector.load %arg1[%c0, %c0_0] : memref<1x128xf32, #tpu.memory_space<vmem>>, vector<1x128xf32>
    %c0_1 = arith.constant 0 : index
    %c0_2 = arith.constant 0 : index
    %1 = vector.load %arg2[%c0_1, %c0_2] : memref<32x1xf32, #tpu.memory_space<vmem>>, vector<32x1xf32>
    %cst = arith.constant dense<0.000000e+00> : vector<32x128xf32>
    %2 = tpu.matmul %1, %0, %cst {dimension_numbers = #tpu.dot_dimension_numbers<[1], [0], [0], [1], [0, 0, 1, 1], [], []>} : vector<32x1xf32>, vector<1x128xf32>, vector<32x128xf32> -> vector<32x128xf32>
    %c0_3 = arith.constant 0 : index
    %c0_4 = arith.constant 0 : index
    %3 = vector.load %arg3[%c0_3, %c0_4] : memref<32x1xf32, #tpu.memory_space<vmem>>, vector<32x1xf32>
    %4 = vector.broadcast %3 : vector<32x1xf32> to vector<32x128xf32>
    %5 = arith.addf %2, %4 : vector<32x128xf32>
    %cst_5 = arith.constant 0.000000e+00 : f32
    %6 = vector.broadcast %cst_5 : f32 to vector<32x128xf32>
    %7 = arith.maximumf %5, %6 : vector<32x128xf32>
    %c0_6 = arith.constant 0 : index
    %c0_7 = arith.constant 0 : index
    %8 = vector.load %arg4[%c0_6, %c0_7] : memref<32x32xf32, #tpu.memory_space<vmem>>, vector<32x32xf32>
    %cst_8 = arith.constant dense<0.000000e+00> : vector<32x128xf32>
    %9 = tpu.matmul %8, %7, %cst_8 {dimension_numbers = #tpu.dot_dimension_numbers<[1], [0], [0], [1], [0, 0, 1, 1], [], []>} : vector<32x32xf32>, vector<32x128xf32>, vector<32x128xf32> -> vector<32x128xf32>
    %c0_9 = arith.constant 0 : index
    %c0_10 = arith.constant 0 : index
    %10 = vector.load %arg5[%c0_9, %c0_10] : memref<32x1xf32, #tpu.memory_space<vmem>>, vector<32x1xf32>
    %11 = vector.broadcast %10 : vector<32x1xf32> to vector<32x128xf32>
    %12 = arith.addf %9, %11 : vector<32x128xf32>
    %cst_11 = arith.constant 0.000000e+00 : f32
    %13 = vector.broadcast %cst_11 : f32 to vector<32x128xf32>
    %14 = arith.maximumf %12, %13 : vector<32x128xf32>
    %c0_12 = arith.constant 0 : index
    %c0_13 = arith.constant 0 : index
    %15 = vector.load %arg6[%c0_12, %c0_13] : memref<1x32xf32, #tpu.memory_space<vmem>>, vector<1x32xf32>
    %cst_14 = arith.constant dense<0.000000e+00> : vector<1x128xf32>
    %16 = tpu.matmul %15, %14, %cst_14 {dimension_numbers = #tpu.dot_dimension_numbers<[1], [0], [0], [1], [0, 0, 1, 1], [], []>} : vector<1x32xf32>, vector<32x128xf32>, vector<1x128xf32> -> vector<1x128xf32>
    %c0_15 = arith.constant 0 : index
    %c0_16 = arith.constant 0 : index
    %17 = memref.load %arg7[%c0_15, %c0_16] : memref<1x1xf32, #tpu.memory_space<smem>>
    %18 = vector.broadcast %17 : f32 to vector<1x128xf32>
    %19 = arith.addf %16, %18 : vector<1x128xf32>
    %c0_17 = arith.constant 0 : index
    %c0_18 = arith.constant 0 : index
    %20 = vector.load %arg8[%c0_17, %c0_18] : memref<1x128xf32, #tpu.memory_space<vmem>>, vector<1x128xf32>
    tpu.vector_store %arg8[%c0_17, %c0_18], %19 {strides = array<i32>} : memref<1x128xf32, #tpu.memory_space<vmem>>, vector<1x128xf32>,
    return
  }
  func.func @transform_0(%arg0: i32) -> (i32, i32) {
    %c0_i32 = arith.constant 0 : i32
    %c0_i32_0 = arith.constant 0 : i32
    return %c0_i32, %arg0 : i32, i32
  }
  func.func @transform_1(%arg0: i32) -> (i32, i32) {
    %c0_i32 = arith.constant 0 : i32
    %c0_i32_0 = arith.constant 0 : i32
    %c0_i32_1 = arith.constant 0 : i32
    return %c0_i32, %c0_i32_0 : i32, i32
  }
  func.func @transform_2(%arg0: i32) -> (i32, i32) {
    %c0_i32 = arith.constant 0 : i32
    %c0_i32_0 = arith.constant 0 : i32
    %c0_i32_1 = arith.constant 0 : i32
    return %c0_i32, %c0_i32_0 : i32, i32
  }
  func.func @transform_3(%arg0: i32) -> (i32, i32) {
    %c0_i32 = arith.constant 0 : i32
    %c0_i32_0 = arith.constant 0 : i32
    %c0_i32_1 = arith.constant 0 : i32
    return %c0_i32, %c0_i32_0 : i32, i32
  }
  func.func @transform_4(%arg0: i32) -> (i32, i32) {
    %c0_i32 = arith.constant 0 : i32
    %c0_i32_0 = arith.constant 0 : i32
    %c0_i32_1 = arith.constant 0 : i32
    return %c0_i32, %c0_i32_0 : i32, i32
  }
  func.func @transform_5(%arg0: i32) -> (i32, i32) {
    %c0_i32 = arith.constant 0 : i32
    %c0_i32_0 = arith.constant 0 : i32
    %c0_i32_1 = arith.constant 0 : i32
    return %c0_i32, %c0_i32_0 : i32, i32
  }
  func.func @transform_6(%arg0: i32) -> (i32, i32) {
    %c0_i32 = arith.constant 0 : i32
    %c0_i32_0 = arith.constant 0 : i32
    %c0_i32_1 = arith.constant 0 : i32
    return %c0_i32, %c0_i32_0 : i32, i32
  }
  func.func @transform_7(%arg0: i32) -> (i32, i32) {
    %c0_i32 = arith.constant 0 : i32
    %c0_i32_0 = arith.constant 0 : i32
    return %c0_i32, %arg0 : i32, i32
  }
}

</mosaic_0001>

<llo_original>
// kernel: tpu_custom_call.1
$region0: #{tpu_custom_call.1}
  #allocation0 [shape = 'u32[]', space=smem, size = 0x4, offset = 0x4, fixed_abs, tag = 'smem constant byte address 0x4 - core index']
  #allocation1 [shape = 'u32[144,128]{1,0:T(1,128)}', space=vmem, size = 0x12000, scoped, tag = 'internal scratch']
  #allocation2 [shape = 'f32[1,1]{1,0:T(1,128)S(6)}', space=smem, size = 0x200, scoped, tag = 'scoped memory for tpu_custom_call.1']
  %s0 = inlined_call_operand.vmem [shape: f32[1,8], index: 0, kind: input, shape index: {}]
  %s1 = inlined_call_operand.vmem [shape: f32[32,1], index: 1, kind: input, shape index: {}]
  %s2 = inlined_call_operand.vmem [shape: f32[32,1], index: 2, kind: input, shape index: {}]
  %s3 = inlined_call_operand.vmem [shape: f32[32,32], index: 3, kind: input, shape index: {}]
  %s4 = inlined_call_operand.vmem [shape: f32[32,1], index: 4, kind: input, shape index: {}]
  %s5 = inlined_call_operand.vmem [shape: f32[1,32], index: 5, kind: input, shape index: {}]
  %s6 = inlined_call_operand.<no memory space> [shape: f32[1,1], index: 6, kind: input, shape index: {}]
  %s7 = inlined_call_operand.hbm [shape: f32[1,8], index: 7, kind: output, shape index: {}]
  %s8 = sld [smem:[#allocation0]]
  $region38: #{tpu_custom_call.1} parent=0
    _
  %s10 = ssub.s32 1, %s8
  %s11 = scalar_select 0, %s10, %s8
  %12 = sst [smem:[#allocation2]] %s6
  $region1: #{tpu_custom_call.1} parent=0
    #allocation3 [shape = 'u8[512]{0}', space=vmem, size = 0x400, scoped, tag = 'output window, operand 0, single buffered']
    #allocation4 [shape = 's32[1]{0}', space=sflag, size = 0x4, scoped, tag = 'scoped memory for tpu_custom_call.1']
    %13 = vsyncpa [#allocation4], 0
    // Predicated region
    $region2: #{tpu_custom_call.1} parent=1 // pred_check
      _
    $region3: #{tpu_custom_call.1} parent=1 // pred_check_branch
      %15 = sbr.rel (0) target = $region5
    $region4: #{tpu_custom_call.1} parent=1 // pred_region
      _
    $region5: #{tpu_custom_call.1} parent=1 // pred_fallthru
      _
    // Predicated region
    $region6: #{tpu_custom_call.1} parent=1 // pred_check
      _
    $region7: #{tpu_custom_call.1} parent=1 // pred_check_branch
      %17 = sbr.rel (0) target = $region9
    $region8: #{tpu_custom_call.1} parent=1 // pred_region
      _
    $region9: #{tpu_custom_call.1} parent=1 // pred_fallthru
      _
    // Predicated region
    $region10: #{tpu_custom_call.1} parent=1 // pred_check
      _
    $region11: #{tpu_custom_call.1} parent=1 // pred_check_branch
      %19 = sbr.rel (0) target = $region13
    $region12: #{tpu_custom_call.1} parent=1 // pred_region
      _
    $region13: #{tpu_custom_call.1} parent=1 // pred_fallthru
      _
    // Predicated region
    $region14: #{tpu_custom_call.1} parent=1 // pred_check
      _
    $region15: #{tpu_custom_call.1} parent=1 // pred_check_branch
      %21 = sbr.rel (0) target = $region17
    $region16: #{tpu_custom_call.1} parent=1 // pred_region
      _
    $region17: #{tpu_custom_call.1} parent=1 // pred_fallthru
      _
    // Predicated region
    $region18: #{tpu_custom_call.1} parent=1 // pred_check
      _
    $region19: #{tpu_custom_call.1} parent=1 // pred_check_branch
      %23 = sbr.rel (0) target = $region21
    $region20: #{tpu_custom_call.1} parent=1 // pred_region
      _
    $region21: #{tpu_custom_call.1} parent=1 // pred_fallthru
      _
    // Predicated region
    $region22: #{tpu_custom_call.1} parent=1 // pred_check
      _
    $region23: #{tpu_custom_call.1} parent=1 // pred_check_branch
      %25 = sbr.rel (0) target = $region25
    $region24: #{tpu_custom_call.1} parent=1 // pred_region
      _
    $region25: #{tpu_custom_call.1} parent=1 // pred_fallthru
      _
    // Predicated region
    $region26: #{tpu_custom_call.1} parent=1 // pred_check
      _
    $region27: #{tpu_custom_call.1} parent=1 // pred_check_branch
      %27 = sbr.rel (0) target = $region29
    $region28: #{tpu_custom_call.1} parent=1 // pred_region
      _
    $region29: #{tpu_custom_call.1} parent=1 // pred_fallthru
      _
    %v28 = vld [vmem:[%s0] sm:$0x1]
    %v29 = vld [vmem:[%s1] sm:$0xff]
    %v30 = vld [vmem:[%s1 + $0x8] sm:$0xff]
    %v31 = vld [vmem:[%s1 + $0x10] sm:$0xff]
    %v32 = vld [vmem:[%s1 + $0x18] sm:$0xff]
    %v33 = vld [vmem:[%s2] sm:$0xff]
    %v34 = vld [vmem:[%s2 + $0x8] sm:$0xff]
    %v35 = vld [vmem:[%s2 + $0x10] sm:$0xff]
    %v36 = vld [vmem:[%s2 + $0x18] sm:$0xff]
    %38 = vset.pattern.permute.xlu0 0
    %39 = vperm.xlu0 %38, %v33
    %v40 = vpop.permute.xlu0 %39
    %43 = vset.pattern.permute.xlu0 0
    %44 = vperm.xlu0 %43, %v34
    %v45 = vpop.permute.xlu0 %44
    %48 = vset.pattern.permute.xlu0 0
    %49 = vperm.xlu0 %48, %v35
    %v50 = vpop.permute.xlu0 %49
    %53 = vset.pattern.permute.xlu0 0
    %54 = vperm.xlu0 %53, %v36
    %v55 = vpop.permute.xlu0 %54
    %vm57 = vcmask 7168
    %v59 = vsel %vm57, %v29, 0
    %v62 = vsel %vm57, %v30, 0
    %v65 = vsel %vm57, %v31, 0
    %v68 = vsel %vm57, %v32, 0
    %vm70 = vcmask 1040384
    %v72 = vsel %vm70, %v28, 0
    %74 = vmatprep.subr.mxu0 0.0
    %75 = vmatpush1.msra.mxu0 %v72
    %76 = vmatprep.subr.mxu0 0.0
    %77 = vmatpush1.msra.mxu0 0.0
    %78 = vmatprep.subr.mxu0 0.0
    %79 = vmatpush1.msra.mxu0 0.0
    %80 = vmatprep.subr.mxu0 0.0
    %81 = vmatpush1.msra.mxu0 0.0
    %82 = vmatprep.subr.mxu0 0.0
    %83 = vmatpush1.msra.mxu0 0.0
    %84 = vmatprep.subr.mxu0 0.0
    %85 = vmatpush1.msra.mxu0 0.0
    %86 = vmatprep.subr.mxu0 0.0
    %87 = vmatpush1.msra.mxu0 0.0
    %88 = vmatprep.subr.mxu0 0.0
    %89 = vmatpush1.msra.mxu0 0.0
    %90 = vmatprep.subr.mxu0 0.0
    %91 = vmatpush1.msra.mxu0 0.0
    %92 = vmatprep.subr.mxu0 0.0
    %93 = vmatpush1.msra.mxu0 0.0
    %94 = vmatprep.subr.mxu0 0.0
    %95 = vmatpush1.msra.mxu0 0.0
    %96 = vmatprep.subr.mxu0 0.0
    %97 = vmatpush1.msra.mxu0 0.0
    %98 = vmatprep.subr.mxu0 0.0
    %99 = vmatpush1.msra.mxu0 0.0
    %100 = vmatprep.subr.mxu0 0.0
    %101 = vmatpush1.msra.mxu0 0.0
    %102 = vmatprep.subr.mxu0 0.0
    %103 = vmatpush1.msra.mxu0 0.0
    %104 = vmatprep.subr.mxu0 0.0
    %105 = vmatpush1.msra.mxu0 0.0
    %106 = vmatprep.subr.mxu0 0.0
    %107 = vmatpush1.msra.mxu0 0.0
    %108 = vmatprep.subr.mxu0 0.0
    %109 = vmatpush1.msra.mxu0 0.0
    %110 = vmatprep.subr.mxu0 0.0
    %111 = vmatpush1.msra.mxu0 0.0
    %112 = vmatprep.subr.mxu0 0.0
    %113 = vmatpush1.msra.mxu0 0.0
    %114 = vmatprep.subr.mxu0 0.0
    %115 = vmatpush1.msra.mxu0 0.0
    %116 = vmatprep.subr.mxu0 0.0
    %117 = vmatpush1.msra.mxu0 0.0
    %118 = vmatprep.subr.mxu0 0.0
    %119 = vmatpush1.msra.mxu0 0.0
    %120 = vmatprep.subr.mxu0 0.0
    %121 = vmatpush1.msra.mxu0 0.0
    %122 = vmatprep.subr.mxu0 0.0
    %123 = vmatpush1.msra.mxu0 0.0
    %124 = vmatprep.subr.mxu0 0.0
    %125 = vmatpush1.msra.mxu0 0.0
    %126 = vmatprep.subr.mxu0 0.0
    %127 = vmatpush1.msra.mxu0 0.0
    %128 = vmatprep.subr.mxu0 0.0
    %129 = vmatpush1.msra.mxu0 0.0
    %130 = vmatprep.subr.mxu0 0.0
    %131 = vmatpush1.msra.mxu0 0.0
    %132 = vmatprep.subr.mxu0 0.0
    %133 = vmatpush1.msra.mxu0 0.0
    %134 = vmatprep.subr.mxu0 0.0
    %135 = vmatpush1.msra.mxu0 0.0
    %136 = vmatprep.subr.mxu0 0.0
    %137 = vmatpush1.msra.mxu0 0.0
    %138 = vmatprep.mubr.f32.mxu0 0.0
    %139 = vmatmul.mubr.f32.gmra.mrb[0].mxu0 %v59
    %v140 = vpop.f32.mrb[0].mxu0
    %v141 = vadd.f32 %v40, %v140
    %v142 = vpop.f32.mrb[0].mxu0
    %143 = vmatprep.mubr.f32.mxu0 0.0
    %144 = vmatmul.mubr.f32.gmra.mrb[0].mxu0 %v62
    %v145 = vpop.f32.mrb[0].mxu0
    %v146 = vadd.f32 %v45, %v145
    %v147 = vpop.f32.mrb[0].mxu0
    %148 = vmatprep.mubr.f32.mxu0 0.0
    %149 = vmatmul.mubr.f32.gmra.mrb[0].mxu0 %v65
    %v150 = vpop.f32.mrb[0].mxu0
    %v151 = vadd.f32 %v50, %v150
    %v152 = vpop.f32.mrb[0].mxu0
    %153 = vmatprep.mubr.f32.mxu0 0.0
    %154 = vmatmul.mubr.f32.gmra.mrb[0].mxu0 %v68
    %v155 = vpop.f32.mrb[0].mxu0
    %v156 = vadd.f32 %v55, %v155
    %v157 = vpop.f32.mrb[0].mxu0
    %158 = vdwg.mxu0
    %v159 = vmax.f32 %v141, 0.0
    %v160 = vmax.f32 %v146, 0.0
    %v161 = vmax.f32 %v151, 0.0
    %v162 = vmax.f32 %v156, 0.0
    %v163 = vld [vmem:[%s3] sm:$0xff]
    %v164 = vld [vmem:[%s3 + $0x8] sm:$0xff]
    %v165 = vld [vmem:[%s3 + $0x10] sm:$0xff]
    %v166 = vld [vmem:[%s3 + $0x18] sm:$0xff]
    %v167 = vld [vmem:[%s4] sm:$0xff]
    %v168 = vld [vmem:[%s4 + $0x8] sm:$0xff]
    %v169 = vld [vmem:[%s4 + $0x10] sm:$0xff]
    %v170 = vld [vmem:[%s4 + $0x18] sm:$0xff]
    %172 = vset.pattern.permute.xlu0 0
    %173 = vperm.xlu0 %172, %v167
    %v174 = vpop.permute.xlu0 %173
    %177 = vset.pattern.permute.xlu0 0
    %178 = vperm.xlu0 %177, %v168
    %v179 = vpop.permute.xlu0 %178
    %182 = vset.pattern.permute.xlu0 0
    %183 = vperm.xlu0 %182, %v169
    %v184 = vpop.permute.xlu0 %183
    %187 = vset.pattern.permute.xlu0 0
    %188 = vperm.xlu0 %187, %v170
    %v189 = vpop.permute.xlu0 %188
    %vm191 = vcmask 261120
    %v193 = vsel %vm191, %v163, 0
    %v196 = vsel %vm191, %v164, 0
    %v199 = vsel %vm191, %v165, 0
    %v202 = vsel %vm191, %v166, 0
    %204 = vmatprep.subr.mxu0 0.0
    %205 = vmatpush1.msra.mxu0 %v159
    %206 = vmatprep.subr.mxu0 0.0
    %207 = vmatpush1.msra.mxu0 %v160
    %208 = vmatprep.subr.mxu0 0.0
    %209 = vmatpush1.msra.mxu0 %v161
    %210 = vmatprep.subr.mxu0 0.0
    %211 = vmatpush1.msra.mxu0 %v162
    %212 = vmatprep.subr.mxu0 0.0
    %213 = vmatpush1.msra.mxu0 0.0
    %214 = vmatprep.subr.mxu0 0.0
    %215 = vmatpush1.msra.mxu0 0.0
    %216 = vmatprep.subr.mxu0 0.0
    %217 = vmatpush1.msra.mxu0 0.0
    %218 = vmatprep.subr.mxu0 0.0
    %219 = vmatpush1.msra.mxu0 0.0
    %220 = vmatprep.subr.mxu0 0.0
    %221 = vmatpush1.msra.mxu0 0.0
    %222 = vmatprep.subr.mxu0 0.0
    %223 = vmatpush1.msra.mxu0 0.0
    %224 = vmatprep.subr.mxu0 0.0
    %225 = vmatpush1.msra.mxu0 0.0
    %226 = vmatprep.subr.mxu0 0.0
    %227 = vmatpush1.msra.mxu0 0.0
    %228 = vmatprep.subr.mxu0 0.0
    %229 = vmatpush1.msra.mxu0 0.0
    %230 = vmatprep.subr.mxu0 0.0
    %231 = vmatpush1.msra.mxu0 0.0
    %232 = vmatprep.subr.mxu0 0.0
    %233 = vmatpush1.msra.mxu0 0.0
    %234 = vmatprep.subr.mxu0 0.0
    %235 = vmatpush1.msra.mxu0 0.0
    %236 = vmatprep.subr.mxu0 0.0
    %237 = vmatpush1.msra.mxu0 0.0
    %238 = vmatprep.subr.mxu0 0.0
    %239 = vmatpush1.msra.mxu0 0.0
    %240 = vmatprep.subr.mxu0 0.0
    %241 = vmatpush1.msra.mxu0 0.0
    %242 = vmatprep.subr.mxu0 0.0
    %243 = vmatpush1.msra.mxu0 0.0
    %244 = vmatprep.subr.mxu0 0.0
    %245 = vmatpush1.msra.mxu0 0.0
    %246 = vmatprep.subr.mxu0 0.0
    %247 = vmatpush1.msra.mxu0 0.0
    %248 = vmatprep.subr.mxu0 0.0
    %249 = vmatpush1.msra.mxu0 0.0
    %250 = vmatprep.subr.mxu0 0.0
    %251 = vmatpush1.msra.mxu0 0.0
    %252 = vmatprep.subr.mxu0 0.0
    %253 = vmatpush1.msra.mxu0 0.0
    %254 = vmatprep.subr.mxu0 0.0
    %255 = vmatpush1.msra.mxu0 0.0
    %256 = vmatprep.subr.mxu0 0.0
    %257 = vmatpush1.msra.mxu0 0.0
    %258 = vmatprep.subr.mxu0 0.0
    %259 = vmatpush1.msra.mxu0 0.0
    %260 = vmatprep.subr.mxu0 0.0
    %261 = vmatpush1.msra.mxu0 0.0
    %262 = vmatprep.subr.mxu0 0.0
    %263 = vmatpush1.msra.mxu0 0.0
    %264 = vmatprep.subr.mxu0 0.0
    %265 = vmatpush1.msra.mxu0 0.0
    %266 = vmatprep.subr.mxu0 0.0
    %267 = vmatpush1.msra.mxu0 0.0
    %268 = vmatprep.mubr.f32.mxu0 0.0
    %269 = vmatmul.mubr.f32.gmra.mrb[0].mxu0 %v193
    %v270 = vpop.f32.mrb[0].mxu0
    %v271 = vadd.f32 %v174, %v270
    %v272 = vpop.f32.mrb[0].mxu0
    %273 = vmatprep.mubr.f32.mxu0 0.0
    %274 = vmatmul.mubr.f32.gmra.mrb[0].mxu0 %v196
    %v275 = vpop.f32.mrb[0].mxu0
    %v276 = vadd.f32 %v179, %v275
    %v277 = vpop.f32.mrb[0].mxu0
    %278 = vmatprep.mubr.f32.mxu0 0.0
    %279 = vmatmul.mubr.f32.gmra.mrb[0].mxu0 %v199
    %v280 = vpop.f32.mrb[0].mxu0
    %v281 = vadd.f32 %v184, %v280
    %v282 = vpop.f32.mrb[0].mxu0
    %283 = vmatprep.mubr.f32.mxu0 0.0
    %284 = vmatmul.mubr.f32.gmra.mrb[0].mxu0 %v202
    %v285 = vpop.f32.mrb[0].mxu0
    %v286 = vadd.f32 %v189, %v285
    %v287 = vpop.f32.mrb[0].mxu0
    %288 = vdwg.mxu0
    %v289 = vmax.f32 %v271, 0.0
    %v290 = vmax.f32 %v276, 0.0
    %v291 = vmax.f32 %v281, 0.0
    %v292 = vmax.f32 %v286, 0.0
    %v293 = vld [vmem:[%s5] sm:$0x1]
    %s294 = sld [smem:[#allocation2]]
    %v295 = vstv %s294
    %v297 = vsel %vm191, %v293, 0
    %299 = vmatprep.subr.mxu0 0.0
    %300 = vmatpush1.msra.mxu0 %v289
    %301 = vmatprep.subr.mxu0 0.0
    %302 = vmatpush1.msra.mxu0 %v290
    %303 = vmatprep.subr.mxu0 0.0
    %304 = vmatpush1.msra.mxu0 %v291
    %305 = vmatprep.subr.mxu0 0.0
    %306 = vmatpush1.msra.mxu0 %v292
    %307 = vmatprep.subr.mxu0 0.0
    %308 = vmatpush1.msra.mxu0 0.0
    %309 = vmatprep.subr.mxu0 0.0
    %310 = vmatpush1.msra.mxu0 0.0
    %311 = vmatprep.subr.mxu0 0.0
    %312 = vmatpush1.msra.mxu0 0.0
    %313 = vmatprep.subr.mxu0 0.0
    %314 = vmatpush1.msra.mxu0 0.0
    %315 = vmatprep.subr.mxu0 0.0
    %316 = vmatpush1.msra.mxu0 0.0
    %317 = vmatprep.subr.mxu0 0.0
    %318 = vmatpush1.msra.mxu0 0.0
    %319 = vmatprep.subr.mxu0 0.0
    %320 = vmatpush1.msra.mxu0 0.0
    %321 = vmatprep.subr.mxu0 0.0
    %322 = vmatpush1.msra.mxu0 0.0
    %323 = vmatprep.subr.mxu0 0.0
    %324 = vmatpush1.msra.mxu0 0.0
    %325 = vmatprep.subr.mxu0 0.0
    %326 = vmatpush1.msra.mxu0 0.0
    %327 = vmatprep.subr.mxu0 0.0
    %328 = vmatpush1.msra.mxu0 0.0
    %329 = vmatprep.subr.mxu0 0.0
    %330 = vmatpush1.msra.mxu0 0.0
    %331 = vmatprep.subr.mxu0 0.0
    %332 = vmatpush1.msra.mxu0 0.0
    %333 = vmatprep.subr.mxu0 0.0
    %334 = vmatpush1.msra.mxu0 0.0
    %335 = vmatprep.subr.mxu0 0.0
    %336 = vmatpush1.msra.mxu0 0.0
    %337 = vmatprep.subr.mxu0 0.0
    %338 = vmatpush1.msra.mxu0 0.0
    %339 = vmatprep.subr.mxu0 0.0
    %340 = vmatpush1.msra.mxu0 0.0
    %341 = vmatprep.subr.mxu0 0.0
    %342 = vmatpush1.msra.mxu0 0.0
    %343 = vmatprep.subr.mxu0 0.0
    %344 = vmatpush1.msra.mxu0 0.0
    %345 = vmatprep.subr.mxu0 0.0
    %346 = vmatpush1.msra.mxu0 0.0
    %347 = vmatprep.subr.mxu0 0.0
    %348 = vmatpush1.msra.mxu0 0.0
    %349 = vmatprep.subr.mxu0 0.0
    %350 = vmatpush1.msra.mxu0 0.0
    %351 = vmatprep.subr.mxu0 0.0
    %352 = vmatpush1.msra.mxu0 0.0
    %353 = vmatprep.subr.mxu0 0.0
    %354 = vmatpush1.msra.mxu0 0.0
    %355 = vmatprep.subr.mxu0 0.0
    %356 = vmatpush1.msra.mxu0 0.0
    %357 = vmatprep.subr.mxu0 0.0
    %358 = vmatpush1.msra.mxu0 0.0
    %359 = vmatprep.subr.mxu0 0.0
    %360 = vmatpush1.msra.mxu0 0.0
    %361 = vmatprep.subr.mxu0 0.0
    %362 = vmatpush1.msra.mxu0 0.0
    %363 = vmatprep.mubr.f32.mxu0 0.0
    %364 = vmatmul.mubr.f32.gmra.mrb[0].mxu0 %v297
    %v365 = vpop.f32.mrb[0].mxu0
    %v366 = vadd.f32 %v295, %v365
    %v367 = vpop.f32.mrb[0].mxu0
    %368 = vdwg.mxu0
    %369 = vst [vmem:[#allocation3] sm:$0x1] %v366
    // Predicated region
    $region30: #{tpu_custom_call.1} parent=1 // pred_check
      _
    $region31: #{tpu_custom_call.1} parent=1 // pred_check_branch
      %371 = sbr.rel (0) target = $region33
    $region32: #{tpu_custom_call.1} parent=1 // pred_region
      %s373 = ssub.s32 16, 16
      %374 = vsyncadd [#allocation4], %s373
      %s376 = sshll.u32 [#allocation3], 4
      %s377 = int_to_ptr.vmem [resolvable:$true] %s376
      %379 = dma.vmem_to_hbm [thread:$0]  %s377, 16, %s7, [#allocation4]
    $region33: #{tpu_custom_call.1} parent=1 // pred_fallthru
      _
    // Predicated region
    $region34: #{tpu_custom_call.1} parent=1 // pred_check
      _
    $region35: #{tpu_custom_call.1} parent=1 // pred_check_branch
      %381 = sbr.rel (0) target = $region37
    $region36: #{tpu_custom_call.1} parent=1 // pred_region
      %382 = dma.done [#allocation4], 16
    $region37: #{tpu_custom_call.1} parent=1 // pred_fallthru
      _
    %383 = vsyncpa [#allocation4], 1

</llo_original>
